<compile_context>
chip_gen: v6e
topology: v6e:2x2x1
jax: 0.10.0
libtpu: 0.0.40
codegen_flags: <defaults>
</compile_context>

<pallas_src>
import functools

import jax
import jax.numpy as jnp
from jax.experimental import pallas as pl
from jax.experimental.pallas import tpu as pltpu

LANE = 128
MAX_TILE_R = 512                      # 512 * 128 = 65536 pixels per grid step
NCORE = 2                             # leading 'parallel' axis (megacore on v7x)
VMEM_LIMIT_BYTES = 32 * 1024 * 1024   # >= v5e default, <= every gen's physical

# Deterministic parameters (torchstain TorchMacenkoNormalizer defaults).
HE_REF = jnp.array([[0.5626, 0.2159],
                    [0.7201, 0.8012],
                    [0.4062, 0.5581]], dtype=jnp.float32)
MAX_C_REF = jnp.array([1.9705, 1.0308], dtype=jnp.float32)


def _cdiv(a, b):
    return (a + b - 1) // b


def _round_up(a, b):
    return _cdiv(a, b) * b


# ----------------------------------------------------------------------------
# Pass 1: masked covariance statistics (reduction, per-core partials).
# ----------------------------------------------------------------------------
def _stats_kernel(x_ref, cnt_ref, sum_ref, outer_ref, *, Io, beta):
    @pl.when(pl.program_id(1) == 0)
    def _init():
        cnt_ref[...] = jnp.zeros_like(cnt_ref)
        sum_ref[...] = jnp.zeros_like(sum_ref)
        outer_ref[...] = jnp.zeros_like(outer_ref)

    od = -jnp.log((x_ref[...] + 1.0) / Io)            # (3, TR, 128)
    od0, od1, od2 = od[0], od[1], od[2]

    # keep pixels where NO channel has OD < beta (torchstain: ~any(OD < beta))
    tissue = jnp.logical_and(jnp.logical_and(od0 >= beta, od1 >= beta),
                             od2 >= beta)
    w = tissue.astype(jnp.float32)

    m0 = od0 * w
    m1 = od1 * w
    m2 = od2 * w

    cnt_ref[...] += jnp.sum(w, keepdims=True).reshape(1, 1, 1)

    sum_ref[...] += jnp.concatenate(
        [jnp.sum(m0, keepdims=True),
         jnp.sum(m1, keepdims=True),
         jnp.sum(m2, keepdims=True)], axis=1).reshape(1, 1, 3)

    # 6 unique masked second moments (symmetric 3x3), stored flat as 9.
    p00 = jnp.sum(m0 * od0, keepdims=True)
    p01 = jnp.sum(m0 * od1, keepdims=True)
    p02 = jnp.sum(m0 * od2, keepdims=True)
    p11 = jnp.sum(m1 * od1, keepdims=True)
    p12 = jnp.sum(m1 * od2, keepdims=True)
    p22 = jnp.sum(m2 * od2, keepdims=True)
    outer_ref[...] += jnp.concatenate(
        [p00, p01, p02, p01, p11, p12, p02, p12, p22], axis=1).reshape(1, 1, 9)


def od_stats(x3, tile_r, inner, Io, beta):
    kernel = functools.partial(_stats_kernel, Io=float(Io), beta=float(beta))
    return pl.pallas_call(
        kernel,
        out_shape=(
            jax.ShapeDtypeStruct((NCORE, 1, 1), jnp.float32),   # tissue count
            jax.ShapeDtypeStruct((NCORE, 1, 3), jnp.float32),   # masked sums
            jax.ShapeDtypeStruct((NCORE, 1, 9), jnp.float32),   # masked outer
        ),
        grid=(NCORE, inner),
        in_specs=[pl.BlockSpec((3, tile_r, LANE),
                               lambda c, i: (0, c * inner + i, 0))],
        out_specs=(
            pl.BlockSpec((1, 1, 1), lambda c, i: (c, 0, 0)),
            pl.BlockSpec((1, 1, 3), lambda c, i: (c, 0, 0)),
            pl.BlockSpec((1, 1, 9), lambda c, i: (c, 0, 0)),
        ),
        compiler_params=pltpu.CompilerParams(
            dimension_semantics=("parallel", "arbitrary"),
            vmem_limit_bytes=VMEM_LIMIT_BYTES),
    )(x3)


# ----------------------------------------------------------------------------
# Pass 2: fused OD + tissue mask + eigen-projection + angle surrogate.
#   s = tan(phi/2) with phi = atan2(t1, t0); strictly monotone in phi, so exact
#   kth-value percentiles of s select the same pixel as percentiles of phi.
#   Non-tissue pixels are set to +inf.
# ----------------------------------------------------------------------------
def _phi_kernel(ev_ref, x_ref, phi_ref, *, Io, beta):
    od = -jnp.log((x_ref[...] + 1.0) / Io)            # (3, TR, 128)
    od0, od1, od2 = od[0], od[1], od[2]
    tissue = jnp.logical_and(jnp.logical_and(od0 >= beta, od1 >= beta),
                             od2 >= beta)

    t0 = ev_ref[0, 0] * od0 + ev_ref[1, 0] * od1 + ev_ref[2, 0] * od2
    t1 = ev_ref[0, 1] * od0 + ev_ref[1, 1] * od1 + ev_ref[2, 1] * od2

    r = jnp.sqrt(t0 * t0 + t1 * t1)
    s = t1 / (r + t0 + 1e-30)                          # tan(phi / 2)
    phi_ref[...] = jnp.where(tissue, s, jnp.inf)


def phi_surrogate(ev, x3, tile_r, Io, beta):
    r_pad = x3.shape[1]
    kernel = functools.partial(_phi_kernel, Io=float(Io), beta=float(beta))
    return pl.pallas_call(
        kernel,
        out_shape=jax.ShapeDtypeStruct((r_pad, LANE), jnp.float32),
        grid=(r_pad // tile_r,),
        in_specs=[pl.BlockSpec(memory_space=pltpu.MemorySpace.SMEM),
                  pl.BlockSpec((3, tile_r, LANE), lambda i: (0, i, 0))],
        out_specs=pl.BlockSpec((tile_r, LANE), lambda i: (i, 0)),
        compiler_params=pltpu.CompilerParams(
            dimension_semantics=("parallel",),
            vmem_limit_bytes=VMEM_LIMIT_BYTES),
    )(ev, x3)


# ----------------------------------------------------------------------------
# Pass 3: concentrations  C(2, N) = pinv(HE)(2,3) @ OD(3, N)  (VPU FMA).
# ----------------------------------------------------------------------------
def _conc_kernel(w_ref, x_ref, conc_ref, *, Io):
    od = -jnp.log((x_ref[...] + 1.0) / Io)             # (3, TR, 128)
    od0, od1, od2 = od[0], od[1], od[2]
    conc_ref[0] = w_ref[0, 0] * od0 + w_ref[0, 1] * od1 + w_ref[0, 2] * od2
    conc_ref[1] = w_ref[1, 0] * od0 + w_ref[1, 1] * od1 + w_ref[1, 2] * od2


def concentrations(pinv_he, x3, tile_r, Io):
    r_pad = x3.shape[1]
    kernel = functools.partial(_conc_kernel, Io=float(Io))
    return pl.pallas_call(
        kernel,
        out_shape=jax.ShapeDtypeStruct((2, r_pad, LANE), jnp.float32),
        grid=(r_pad // tile_r,),
        in_specs=[pl.BlockSpec(memory_space=pltpu.MemorySpace.SMEM),
                  pl.BlockSpec((3, tile_r, LANE), lambda i: (0, i, 0))],
        out_specs=pl.BlockSpec((2, tile_r, LANE), lambda i: (0, i, 0)),
        compiler_params=pltpu.CompilerParams(
            dimension_semantics=("parallel",),
            vmem_limit_bytes=VMEM_LIMIT_BYTES),
    )(pinv_he, x3)


# ----------------------------------------------------------------------------
# Pass 4: Inorm = clip(Io * exp(-(HERef*scale) @ C), 255).int()
#   (the per-stain scale is folded into heref_scaled in glue).
# ----------------------------------------------------------------------------
def _renorm_kernel(hs_ref, conc_ref, out_ref, *, Io):
    c0 = conc_ref[0]
    c1 = conc_ref[1]
    for ch in range(3):                                # unrolled at trace time
        v = Io * jnp.exp(-(hs_ref[ch, 0] * c0 + hs_ref[ch, 1] * c1))
        out_ref[ch] = jnp.minimum(v, 255.0).astype(jnp.int32)


def renorm(heref_scaled, conc3, tile_r, Io):
    r_pad = conc3.shape[1]
    kernel = functools.partial(_renorm_kernel, Io=float(Io))
    return pl.pallas_call(
        kernel,
        out_shape=jax.ShapeDtypeStruct((3, r_pad, LANE), jnp.int32),
        grid=(r_pad // tile_r,),
        in_specs=[pl.BlockSpec(memory_space=pltpu.MemorySpace.SMEM),
                  pl.BlockSpec((2, tile_r, LANE), lambda i: (0, i, 0))],
        out_specs=pl.BlockSpec((3, tile_r, LANE), lambda i: (0, i, 0)),
        compiler_params=pltpu.CompilerParams(
            dimension_semantics=("parallel",),
            vmem_limit_bytes=VMEM_LIMIT_BYTES),
    )(heref_scaled, conc3)


# ----------------------------------------------------------------------------
# Glue
# ----------------------------------------------------------------------------
def macenko_batch_forward(x, Io=240, alpha=1, beta=0.15):
    """x: (B, 3, H, W) float32 RGB in [0, 255] (NCHW). Returns (B, 3, H, W) int32."""
    B, C, H, W = x.shape
    assert C == 3
    N = B * H * W

    x2d = jnp.transpose(x, (1, 0, 2, 3)).reshape(C, N).astype(jnp.float32)

    # Pixel tiling: rows of 128 lanes; pad with white (255) pixels which are
    # guaranteed non-tissue (OD < beta), so they never affect the statistics.
    rows = _cdiv(N, LANE)
    if rows >= NCORE * MAX_TILE_R:
        tile_r = MAX_TILE_R
    else:
        tile_r = _round_up(_cdiv(rows, NCORE), 8)
    inner = _cdiv(rows, NCORE * tile_r)
    r_pad = NCORE * inner * tile_r
    n_pad = r_pad * LANE

    x2d = jnp.pad(x2d, ((0, 0), (0, n_pad - N)), constant_values=255.0)
    x3 = x2d.reshape(C, r_pad, LANE)

    # --- pass 1: masked covariance stats (Pallas, per-core partials) ---------
    cnt_p, sum_p, outer_p = od_stats(x3, tile_r, inner, Io, beta)
    m = jnp.sum(cnt_p)                                        # tissue count
    s = jnp.sum(sum_p, axis=(0, 1)).reshape(3, 1)
    outer = jnp.sum(outer_p, axis=(0, 1)).reshape(3, 3)
    cov = (outer - (s @ s.T) / m) / (m - 1.0)                 # cov(ODhat.T)

    # TODO(synk): tiny 3x3 symmetric eigendecomposition has no clean Pallas
    # equivalent; kept in JAX glue (as is the 2x2 normal-equation solve below).
    _, eigvecs = jnp.linalg.eigh(cov)                         # ascending
    ev = eigvecs[:, 1:3].astype(jnp.float32)                  # two largest (3,2)

    # --- pass 2: fused projection + mask + angle surrogate -------------------
    s_surr = phi_surrogate(ev, x3, tile_r, Io, beta)          # (r_pad, 128)

    # TODO(synk): exact kth-value percentiles still use an XLA sort in glue; a
    # streaming Pallas histogram/selection percentile would avoid the
    # O(N log N) full passes.
    s_sorted = jnp.sort(s_surr.reshape(-1))                   # tissue first, +inf last
    k_min = 1 + jnp.round(0.01 * alpha * (m - 1.0)).astype(jnp.int32)
    k_max = 1 + jnp.round(0.01 * (100.0 - alpha) * (m - 1.0)).astype(jnp.int32)
    min_phi = 2.0 * jnp.arctan(jnp.take(s_sorted, k_min - 1))
    max_phi = 2.0 * jnp.arctan(jnp.take(s_sorted, k_max - 1))

    v_min = ev @ jnp.stack([jnp.cos(min_phi), jnp.sin(min_phi)])
    v_max = ev @ jnp.stack([jnp.cos(max_phi), jnp.sin(max_phi)])
    HE = jnp.where(v_min[0] > v_max[0],
                   jnp.stack([v_min, v_max], axis=1),
                   jnp.stack([v_max, v_min], axis=1)).astype(jnp.float32)  # (3,2)

    # C = lstsq(HE, OD.T) via normal equations (HE has full column rank).
    pinv_he = jnp.linalg.solve(HE.T @ HE, HE.T).astype(jnp.float32)        # (2,3)

    # --- pass 3: concentrations ----------------------------------------------
    conc3 = concentrations(pinv_he, x3, tile_r, Io)           # (2, r_pad, 128)

    # maxC = 99th percentile per stain over the ORIGINAL N pixels.
    conc_flat = conc3.reshape(2, n_pad)[:, :N]
    k99 = 1 + int(round(0.99 * (N - 1)))
    conc_sorted = jnp.sort(conc_flat, axis=1)
    max_c = conc_sorted[:, k99 - 1]                           # (2,)
    scale = (MAX_C_REF / max_c).astype(jnp.float32)

    # Fold per-stain scale into the reference stain matrix (saves a DMA + mul).
    heref_scaled = (HE_REF * scale[None, :]).astype(jnp.float32)           # (3,2)

    # --- pass 4: recolor ------------------------------------------------------
    inorm3 = renorm(heref_scaled, conc3, tile_r, Io)          # (3, r_pad, 128) int32
    inorm = inorm3.reshape(C, n_pad)[:, :N].reshape(C, B, H, W)
    return jnp.transpose(inorm, (1, 0, 2, 3))


if __name__ == "__main__":
    key = jax.random.PRNGKey(0)
    # Small NCHW batch of RGB "tiles", integer pixel values in [0, 255].
    x = jax.random.randint(key, (2, 3, 16, 16), 0, 256).astype(jnp.float32)

    y = macenko_batch_forward(x, Io=240, alpha=1, beta=0.15)
    y = jax.block_until_ready(y)

    assert y.shape == (2, 3, 16, 16)
    assert y.dtype == jnp.int32
    print("KERNEL_OK")
</pallas_src>

<mosaic_0001>
module attributes {stable_mosaic.version = 11 : i64} {
  func.func @_stats_kernel(%arg0: i32, %arg1: i32, %arg2: memref<3x8x128xf32, #tpu.memory_space<vmem>>, %arg3: memref<1x1x1xf32, #tpu.memory_space<vmem>>, %arg4: memref<1x1x3xf32, #tpu.memory_space<vmem>>, %arg5: memref<1x1x9xf32, #tpu.memory_space<vmem>>) attributes {dimension_semantics = [#tpu.dimension_semantics<parallel>, #tpu.dimension_semantics<arbitrary>], iteration_bounds = array<i64: 2, 1>, scalar_prefetch = 0 : i64, scratch_operands = 0 : i64, tpu.core_type = #tpu.core_type<tc>, window_params = [{transform_indices = @transform_0, window_bounds = array<i64: 3, 8, 128>}, {transform_indices = @transform_1, window_bounds = array<i64: 1, 1, 1>}, {transform_indices = @transform_2, window_bounds = array<i64: 1, 1, 3>}, {transform_indices = @transform_3, window_bounds = array<i64: 1, 1, 9>}]} {
    %c0_i32 = arith.constant 0 : i32
    %0 = arith.cmpi eq, %arg1, %c0_i32 : i32
    %1 = arith.extui %0 : i1 to i32
    %c0_i32_0 = arith.constant 0 : i32
    %2 = arith.cmpi ne, %1, %c0_i32_0 : i32
    scf.if %2 {
      %cst_36 = arith.constant 0.000000e+00 : f32
      %100 = vector.broadcast %cst_36 : f32 to vector<1x1x1xf32>
      %c0_37 = arith.constant 0 : index
      %c0_38 = arith.constant 0 : index
      %c0_39 = arith.constant 0 : index
      %101 = vector.load %arg3[%c0_37, %c0_38, %c0_39] : memref<1x1x1xf32, #tpu.memory_space<vmem>>, vector<1x1x1xf32>
      tpu.vector_store %arg3[%c0_37, %c0_38, %c0_39], %100 {strides = array<i32>} : memref<1x1x1xf32, #tpu.memory_space<vmem>>, vector<1x1x1xf32>,
      %cst_40 = arith.constant 0.000000e+00 : f32
      %102 = vector.broadcast %cst_40 : f32 to vector<1x1x3xf32>
      %c0_41 = arith.constant 0 : index
      %c0_42 = arith.constant 0 : index
      %c0_43 = arith.constant 0 : index
      %103 = vector.load %arg4[%c0_41, %c0_42, %c0_43] : memref<1x1x3xf32, #tpu.memory_space<vmem>>, vector<1x1x3xf32>
      tpu.vector_store %arg4[%c0_41, %c0_42, %c0_43], %102 {strides = array<i32>} : memref<1x1x3xf32, #tpu.memory_space<vmem>>, vector<1x1x3xf32>,
      %cst_44 = arith.constant 0.000000e+00 : f32
      %104 = vector.broadcast %cst_44 : f32 to vector<1x1x9xf32>
      %c0_45 = arith.constant 0 : index
      %c0_46 = arith.constant 0 : index
      %c0_47 = arith.constant 0 : index
      %105 = vector.load %arg5[%c0_45, %c0_46, %c0_47] : memref<1x1x9xf32, #tpu.memory_space<vmem>>, vector<1x1x9xf32>
      tpu.vector_store %arg5[%c0_45, %c0_46, %c0_47], %104 {strides = array<i32>} : memref<1x1x9xf32, #tpu.memory_space<vmem>>, vector<1x1x9xf32>,
    } else {
    }
    %c0 = arith.constant 0 : index
    %c0_1 = arith.constant 0 : index
    %c0_2 = arith.constant 0 : index
    %3 = vector.load %arg2[%c0, %c0_1, %c0_2] : memref<3x8x128xf32, #tpu.memory_space<vmem>>, vector<3x8x128xf32>
    %cst = arith.constant 1.000000e+00 : f32
    %4 = vector.broadcast %cst : f32 to vector<3x8x128xf32>
    %5 = arith.addf %3, %4 : vector<3x8x128xf32>
    %cst_3 = arith.constant 2.400000e+02 : f32
    %6 = vector.broadcast %cst_3 : f32 to vector<3x8x128xf32>
    %7 = arith.divf %5, %6 : vector<3x8x128xf32>
    %8 = math.log %7 : vector<3x8x128xf32>
    %cst_4 = arith.constant 0.000000e+00 : f32
    %9 = vector.broadcast %cst_4 : f32 to vector<3x8x128xf32>
    %10 = arith.subf %9, %8 : vector<3x8x128xf32>
    %11 = vector.extract_strided_slice %10 {offsets = [0, 0, 0], sizes = [1, 8, 128], strides = [1, 1, 1]} : vector<3x8x128xf32> to vector<1x8x128xf32>
    %12 = vector.shape_cast %11 : vector<1x8x128xf32> to vector<8x128xf32>
    %13 = vector.extract_strided_slice %10 {offsets = [1, 0, 0], sizes = [1, 8, 128], strides = [1, 1, 1]} : vector<3x8x128xf32> to vector<1x8x128xf32>
    %14 = vector.shape_cast %13 : vector<1x8x128xf32> to vector<8x128xf32>
    %15 = vector.extract_strided_slice %10 {offsets = [2, 0, 0], sizes = [1, 8, 128], strides = [1, 1, 1]} : vector<3x8x128xf32> to vector<1x8x128xf32>
    %16 = vector.shape_cast %15 : vector<1x8x128xf32> to vector<8x128xf32>
    %cst_5 = arith.constant 1.500000e-01 : f32
    %17 = vector.broadcast %cst_5 : f32 to vector<8x128xf32>
    %18 = arith.cmpf oge, %12, %17 : vector<8x128xf32>
    %cst_6 = arith.constant 1.500000e-01 : f32
    %19 = vector.broadcast %cst_6 : f32 to vector<8x128xf32>
    %20 = arith.cmpf oge, %14, %19 : vector<8x128xf32>
    %21 = arith.andi %18, %20 : vector<8x128xi1>
    %cst_7 = arith.constant 1.500000e-01 : f32
    %22 = vector.broadcast %cst_7 : f32 to vector<8x128xf32>
    %23 = arith.cmpf oge, %16, %22 : vector<8x128xf32>
    %24 = arith.andi %21, %23 : vector<8x128xi1>
    %25 = arith.extui %24 : vector<8x128xi1> to vector<8x128xi32>
    %26 = arith.sitofp %25 : vector<8x128xi32> to vector<8x128xf32>
    %27 = arith.mulf %12, %26 : vector<8x128xf32>
    %28 = arith.mulf %14, %26 : vector<8x128xf32>
    %29 = arith.mulf %16, %26 : vector<8x128xf32>
    %c0_8 = arith.constant 0 : index
    %c0_9 = arith.constant 0 : index
    %c0_10 = arith.constant 0 : index
    %30 = vector.load %arg3[%c0_8, %c0_9, %c0_10] : memref<1x1x1xf32, #tpu.memory_space<vmem>>, vector<1x1x1xf32>
    %31 = vector.shape_cast %26 : vector<8x128xf32> to vector<1x8x128xf32>
    %cst_11 = arith.constant dense<0.000000e+00> : vector<1xf32>
    %32 = vector.multi_reduction <add>, %31, %cst_11 [1, 2] : vector<1x8x128xf32> to vector<1xf32>
    %33 = vector.shape_cast %32 : vector<1xf32> to vector<1x1x1xf32>
    %34 = vector.extract %33[0, 0, 0] : f32 from vector<1x1x1xf32>
    %35 = vector.broadcast %34 : f32 to vector<1x1xf32>
    %36 = vector.shape_cast %35 : vector<1x1xf32> to vector<1x1x1xf32>
    %37 = arith.addf %30, %36 : vector<1x1x1xf32>
    %c0_12 = arith.constant 0 : index
    %c0_13 = arith.constant 0 : index
    %c0_14 = arith.constant 0 : index
    %38 = vector.load %arg3[%c0_12, %c0_13, %c0_14] : memref<1x1x1xf32, #tpu.memory_space<vmem>>, vector<1x1x1xf32>
    tpu.vector_store %arg3[%c0_12, %c0_13, %c0_14], %37 {strides = array<i32>} : memref<1x1x1xf32, #tpu.memory_space<vmem>>, vector<1x1x1xf32>,
    %c0_15 = arith.constant 0 : index
    %c0_16 = arith.constant 0 : index
    %c0_17 = arith.constant 0 : index
    %39 = vector.load %arg4[%c0_15, %c0_16, %c0_17] : memref<1x1x3xf32, #tpu.memory_space<vmem>>, vector<1x1x3xf32>
    %40 = vector.shape_cast %27 : vector<8x128xf32> to vector<1x8x128xf32>
    %cst_18 = arith.constant dense<0.000000e+00> : vector<1xf32>
    %41 = vector.multi_reduction <add>, %40, %cst_18 [1, 2] : vector<1x8x128xf32> to vector<1xf32>
    %42 = vector.shape_cast %41 : vector<1xf32> to vector<1x1x1xf32>
    %43 = vector.extract %42[0, 0, 0] : f32 from vector<1x1x1xf32>
    %44 = vector.broadcast %43 : f32 to vector<1x1xf32>
    %45 = vector.shape_cast %28 : vector<8x128xf32> to vector<1x8x128xf32>
    %cst_19 = arith.constant dense<0.000000e+00> : vector<1xf32>
    %46 = vector.multi_reduction <add>, %45, %cst_19 [1, 2] : vector<1x8x128xf32> to vector<1xf32>
    %47 = vector.shape_cast %46 : vector<1xf32> to vector<1x1x1xf32>
    %48 = vector.extract %47[0, 0, 0] : f32 from vector<1x1x1xf32>
    %49 = vector.broadcast %48 : f32 to vector<1x1xf32>
    %50 = vector.shape_cast %29 : vector<8x128xf32> to vector<1x8x128xf32>
    %cst_20 = arith.constant dense<0.000000e+00> : vector<1xf32>
    %51 = vector.multi_reduction <add>, %50, %cst_20 [1, 2] : vector<1x8x128xf32> to vector<1xf32>
    %52 = vector.shape_cast %51 : vector<1xf32> to vector<1x1x1xf32>
    %53 = vector.extract %52[0, 0, 0] : f32 from vector<1x1x1xf32>
    %54 = vector.broadcast %53 : f32 to vector<1x1xf32>
    %55 = tpu.concatenate %44, %49, %54 in 1 : vector<1x1xf32>, vector<1x1xf32>, vector<1x1xf32> -> vector<1x3xf32>
    %56 = vector.shape_cast %55 : vector<1x3xf32> to vector<1x1x3xf32>
    %57 = arith.addf %39, %56 : vector<1x1x3xf32>
    %c0_21 = arith.constant 0 : index
    %c0_22 = arith.constant 0 : index
    %c0_23 = arith.constant 0 : index
    %58 = vector.load %arg4[%c0_21, %c0_22, %c0_23] : memref<1x1x3xf32, #tpu.memory_space<vmem>>, vector<1x1x3xf32>
    tpu.vector_store %arg4[%c0_21, %c0_22, %c0_23], %57 {strides = array<i32>} : memref<1x1x3xf32, #tpu.memory_space<vmem>>, vector<1x1x3xf32>,
    %59 = arith.mulf %27, %12 : vector<8x128xf32>
    %60 = vector.shape_cast %59 : vector<8x128xf32> to vector<1x8x128xf32>
    %cst_24 = arith.constant dense<0.000000e+00> : vector<1xf32>
    %61 = vector.multi_reduction <add>, %60, %cst_24 [1, 2] : vector<1x8x128xf32> to vector<1xf32>
    %62 = vector.shape_cast %61 : vector<1xf32> to vector<1x1x1xf32>
    %63 = vector.extract %62[0, 0, 0] : f32 from vector<1x1x1xf32>
    %64 = vector.broadcast %63 : f32 to vector<1x1xf32>
    %65 = arith.mulf %27, %14 : vector<8x128xf32>
    %66 = vector.shape_cast %65 : vector<8x128xf32> to vector<1x8x128xf32>
    %cst_25 = arith.constant dense<0.000000e+00> : vector<1xf32>
    %67 = vector.multi_reduction <add>, %66, %cst_25 [1, 2] : vector<1x8x128xf32> to vector<1xf32>
    %68 = vector.shape_cast %67 : vector<1xf32> to vector<1x1x1xf32>
    %69 = vector.extract %68[0, 0, 0] : f32 from vector<1x1x1xf32>
    %70 = vector.broadcast %69 : f32 to vector<1x1xf32>
    %71 = arith.mulf %27, %16 : vector<8x128xf32>
    %72 = vector.shape_cast %71 : vector<8x128xf32> to vector<1x8x128xf32>
    %cst_26 = arith.constant dense<0.000000e+00> : vector<1xf32>
    %73 = vector.multi_reduction <add>, %72, %cst_26 [1, 2] : vector<1x8x128xf32> to vector<1xf32>
    %74 = vector.shape_cast %73 : vector<1xf32> to vector<1x1x1xf32>
    %75 = vector.extract %74[0, 0, 0] : f32 from vector<1x1x1xf32>
    %76 = vector.broadcast %75 : f32 to vector<1x1xf32>
    %77 = arith.mulf %28, %14 : vector<8x128xf32>
    %78 = vector.shape_cast %77 : vector<8x128xf32> to vector<1x8x128xf32>
    %cst_27 = arith.constant dense<0.000000e+00> : vector<1xf32>
    %79 = vector.multi_reduction <add>, %78, %cst_27 [1, 2] : vector<1x8x128xf32> to vector<1xf32>
    %80 = vector.shape_cast %79 : vector<1xf32> to vector<1x1x1xf32>
    %81 = vector.extract %80[0, 0, 0] : f32 from vector<1x1x1xf32>
    %82 = vector.broadcast %81 : f32 to vector<1x1xf32>
    %83 = arith.mulf %28, %16 : vector<8x128xf32>
    %84 = vector.shape_cast %83 : vector<8x128xf32> to vector<1x8x128xf32>
    %cst_28 = arith.constant dense<0.000000e+00> : vector<1xf32>
    %85 = vector.multi_reduction <add>, %84, %cst_28 [1, 2] : vector<1x8x128xf32> to vector<1xf32>
    %86 = vector.shape_cast %85 : vector<1xf32> to vector<1x1x1xf32>
    %87 = vector.extract %86[0, 0, 0] : f32 from vector<1x1x1xf32>
    %88 = vector.broadcast %87 : f32 to vector<1x1xf32>
    %89 = arith.mulf %29, %16 : vector<8x128xf32>
    %90 = vector.shape_cast %89 : vector<8x128xf32> to vector<1x8x128xf32>
    %cst_29 = arith.constant dense<0.000000e+00> : vector<1xf32>
    %91 = vector.multi_reduction <add>, %90, %cst_29 [1, 2] : vector<1x8x128xf32> to vector<1xf32>
    %92 = vector.shape_cast %91 : vector<1xf32> to vector<1x1x1xf32>
    %93 = vector.extract %92[0, 0, 0] : f32 from vector<1x1x1xf32>
    %94 = vector.broadcast %93 : f32 to vector<1x1xf32>
    %c0_30 = arith.constant 0 : index
    %c0_31 = arith.constant 0 : index
    %c0_32 = arith.constant 0 : index
    %95 = vector.load %arg5[%c0_30, %c0_31, %c0_32] : memref<1x1x9xf32, #tpu.memory_space<vmem>>, vector<1x1x9xf32>
    %96 = tpu.concatenate %64, %70, %76, %70, %82, %88, %76, %88, %94 in 1 : vector<1x1xf32>, vector<1x1xf32>, vector<1x1xf32>, vector<1x1xf32>, vector<1x1xf32>, vector<1x1xf32>, vector<1x1xf32>, vector<1x1xf32>, vector<1x1xf32> -> vector<1x9xf32>
    %97 = vector.shape_cast %96 : vector<1x9xf32> to vector<1x1x9xf32>
    %98 = arith.addf %95, %97 : vector<1x1x9xf32>
    %c0_33 = arith.constant 0 : index
    %c0_34 = arith.constant 0 : index
    %c0_35 = arith.constant 0 : index
    %99 = vector.load %arg5[%c0_33, %c0_34, %c0_35] : memref<1x1x9xf32, #tpu.memory_space<vmem>>, vector<1x1x9xf32>
    tpu.vector_store %arg5[%c0_33, %c0_34, %c0_35], %98 {strides = array<i32>} : memref<1x1x9xf32, #tpu.memory_space<vmem>>, vector<1x1x9xf32>,
    return
  }
  func.func @transform_0(%arg0: i32, %arg1: i32) -> (i32, i32, i32) {
    %c1_i32 = arith.constant 1 : i32
    %0 = arith.muli %arg0, %c1_i32 : i32
    %1 = arith.addi %0, %arg1 : i32
    %c0_i32 = arith.constant 0 : i32
    %c0_i32_0 = arith.constant 0 : i32
    %c0_i32_1 = arith.constant 0 : i32
    return %c0_i32, %1, %c0_i32_0 : i32, i32, i32
  }
  func.func @transform_1(%arg0: i32, %arg1: i32) -> (i32, i32, i32) {
    %c0_i32 = arith.constant 0 : i32
    %c0_i32_0 = arith.constant 0 : i32
    %c0_i32_1 = arith.constant 0 : i32
    return %arg0, %c0_i32, %c0_i32_0 : i32, i32, i32
  }
  func.func @transform_2(%arg0: i32, %arg1: i32) -> (i32, i32, i32) {
    %c0_i32 = arith.constant 0 : i32
    %c0_i32_0 = arith.constant 0 : i32
    %c0_i32_1 = arith.constant 0 : i32
    return %arg0, %c0_i32, %c0_i32_0 : i32, i32, i32
  }
  func.func @transform_3(%arg0: i32, %arg1: i32) -> (i32, i32, i32) {
    %c0_i32 = arith.constant 0 : i32
    %c0_i32_0 = arith.constant 0 : i32
    %c0_i32_1 = arith.constant 0 : i32
    return %arg0, %c0_i32, %c0_i32_0 : i32, i32, i32
  }
}

</mosaic_0001>

<llo_original>
// kernel: tpu_custom_call.1
$region0: #{tpu_custom_call.1}
  #allocation0 [shape = 'u32[]', space=smem, size = 0x4, offset = 0x4, fixed_abs, tag = 'smem constant byte address 0x4 - core index']
  #allocation1 [shape = 'u32[144,128]{1,0:T(1,128)}', space=vmem, size = 0x12000, scoped, tag = 'internal scratch']
  %s0 = inlined_call_operand.hbm [shape: f32[3,16,128], index: 0, kind: input, shape index: {}]
  %s1 = inlined_call_operand.vmem [shape: f32[2,1,1], index: 1, kind: output, shape index: {0}]
  %s2 = inlined_call_operand.hbm [shape: f32[2,1,3], index: 2, kind: output, shape index: {1}]
  %s3 = inlined_call_operand.hbm [shape: f32[2,1,9], index: 3, kind: output, shape index: {2}]
  %4 = xla_tuple %s1, %s2, %s3
  %s5 = sld [smem:[#allocation0]]
  $region61: #{tpu_custom_call.1} parent=0
    _
  %s7 = ssub.s32 1, %s5
  %s8 = scalar_select 0, %s7, %s5
  $region1: #{tpu_custom_call.1} parent=0
    #allocation2 [shape = 'u8[24576]{0}', space=vmem, size = 0x6000, scoped, tag = 'input window, operand 0']
    #allocation3 [shape = 's32[2]{0}', space=sflag, size = 0x8, scoped, tag = 'scoped memory for tpu_custom_call.1']
    #allocation4 [shape = 's32[2]{0}', space=sflag, size = 0x8, scoped, tag = 'scoped memory for tpu_custom_call.1']
    #allocation5 [shape = 'u8[1024]{0}', space=vmem, size = 0x400, scoped, tag = 'output window, operand 1']
    #allocation6 [shape = 'u8[1024]{0}', space=vmem, size = 0x400, scoped, tag = 'output window, operand 2']
    #allocation7 [shape = 's32[2]{0}', space=sflag, size = 0x8, scoped, tag = 'scoped memory for tpu_custom_call.1']
    %9 = vsyncpa [#allocation3], 0
    %s10 = scalar_lea.sflag [#allocation3], 1
    %11 = vsyncpa %s10, 0
    %12 = vsyncpa [#allocation4], 0
    %s13 = scalar_lea.sflag [#allocation4], 1
    %14 = vsyncpa %s13, 0
    %15 = vsyncpa [#allocation7], 0
    %s16 = scalar_lea.sflag [#allocation7], 1
    %17 = vsyncpa %s16, 0
    loop: start=0, step=1, limit=4
    $region2: #{tpu_custom_call.1} parent=1 // loop_pre_header
      _
    $region3: #{tpu_custom_call.1} parent=1 // loop_header
      %s19 = sphi 0, %s23
      %p20 = scmp.ge.s32.totalorder %s19, 4
      %s26 = sphi 0, %s38
      %s27 = sphi 0, %s34
      %s28 = sphi 0, %s26
      %s29 = sphi 0, %s27
      %s30 = sphi 0, %s28
      %s31 = sphi 0, %s29
      %s43 = sphi 0, %s45
      %s46 = sphi 0, %s43
      %s47 = sphi 0, %s46
      %s63 = sphi 0, %s47
      %s69 = sphi 0, %s71
      %s72 = sphi 0, %s69
      %s73 = sphi 0, %s72
      %s89 = sphi 0, %s73
      %s95 = sphi 0, %s97
      %s98 = sphi 0, %s95
      %s99 = sphi 0, %s98
      %s115 = sphi 0, %s99
      %s121 = sphi 0, %s123
      %s124 = sphi 0, %s121
      %s125 = sphi 0, %s124
      %s141 = sphi 0, %s125
    $region4: #{tpu_custom_call.1} parent=1 // loop_header_branch
      %22 = sbr.rel (%p20) target = $region8
    $region5: #{tpu_custom_call.1} parent=1 // loop_body
      %s24 = ssub.s32 %s19, 1
      %s25 = ssub.s32 %s19, 2
      %s32 = sadd.s32 1, %s27
      %p33 = scmp.ge.s32.totalorder %s32, 1
      %s34 = scalar_select %p33, 0, %s32
      %s35 = sadd.s32 1, %s26
      %s36 = scalar_select %p33, %s35, %s26
      %p37 = scmp.ge.s32.totalorder %s36, 2
      %s38 = scalar_select %p37, 0, %s36
      %s39 = sadd.s32 %s26, %s27
      %s40 = sadd.s32 %s38, %s34
      %s41 = ssub.s32 %s39, %s40
      %p42 = scmp.eq.s32.totalorder %s41, 0
      %s44 = sadd.s32 %s43, 1
      %s45 = scalar_select %p42, %s43, %s44
      %p48 = pneg %p42
      %p49 = scmp.eq.s32.totalorder %s19, 1
      %p50 = por %p48, %p49
      %p51 = scmp.ne.s32.totalorder %s43, %s46
      %p52 = scmp.eq.s32.totalorder %s19, 0
      %p53 = por %p51, %p52
      %p54 = scmp.ne.s32.totalorder %s43, %s46
      %p55 = scmp.eq.s32.totalorder %s24, 1
      %p56 = por %p54, %p55
      %p57 = scmp.ne.s32.totalorder %s46, %s47
      %p58 = scmp.eq.s32.totalorder %s24, 0
      %p59 = por %p57, %p58
      %p60 = scmp.ne.s32.totalorder %s46, %s47
      %p61 = scmp.eq.s32.totalorder %s25, 1
      %p62 = por %p60, %p61
      %p64 = scmp.ne.s32.totalorder %s47, %s63
      %p65 = scmp.eq.s32.totalorder %s25, 0
      %p66 = por %p64, %p65
      %s67 = ssub.s32 %s26, %s38
      %p68 = scmp.eq.s32.totalorder %s67, 0
      %s70 = sadd.s32 %s69, 1
      %s71 = scalar_select %p68, %s69, %s70
      %p74 = pneg %p68
      %p75 = scmp.eq.s32.totalorder %s19, 1
      %p76 = por %p74, %p75
      %p77 = scmp.ne.s32.totalorder %s69, %s72
      %p78 = scmp.eq.s32.totalorder %s19, 0
      %p79 = por %p77, %p78
      %p80 = scmp.ne.s32.totalorder %s69, %s72
      %p81 = scmp.eq.s32.totalorder %s24, 1
      %p82 = por %p80, %p81
      %p83 = scmp.ne.s32.totalorder %s72, %s73
      %p84 = scmp.eq.s32.totalorder %s24, 0
      %p85 = por %p83, %p84
      %p86 = scmp.ne.s32.totalorder %s72, %s73
      %p87 = scmp.eq.s32.totalorder %s25, 1
      %p88 = por %p86, %p87
      %p90 = scmp.ne.s32.totalorder %s73, %s89
      %p91 = scmp.eq.s32.totalorder %s25, 0
      %p92 = por %p90, %p91
      %s93 = ssub.s32 %s26, %s38
      %p94 = scmp.eq.s32.totalorder %s93, 0
      %s96 = sadd.s32 %s95, 1
      %s97 = scalar_select %p94, %s95, %s96
      %p100 = pneg %p94
      %p101 = scmp.eq.s32.totalorder %s19, 1
      %p102 = por %p100, %p101
      %p103 = scmp.ne.s32.totalorder %s95, %s98
      %p104 = scmp.eq.s32.totalorder %s19, 0
      %p105 = por %p103, %p104
      %p106 = scmp.ne.s32.totalorder %s95, %s98
      %p107 = scmp.eq.s32.totalorder %s24, 1
      %p108 = por %p106, %p107
      %p109 = scmp.ne.s32.totalorder %s98, %s99
      %p110 = scmp.eq.s32.totalorder %s24, 0
      %p111 = por %p109, %p110
      %p112 = scmp.ne.s32.totalorder %s98, %s99
      %p113 = scmp.eq.s32.totalorder %s25, 1
      %p114 = por %p112, %p113
      %p116 = scmp.ne.s32.totalorder %s99, %s115
      %p117 = scmp.eq.s32.totalorder %s25, 0
      %p118 = por %p116, %p117
      %s119 = ssub.s32 %s26, %s38
      %p120 = scmp.eq.s32.totalorder %s119, 0
      %s122 = sadd.s32 %s121, 1
      %s123 = scalar_select %p120, %s121, %s122
      %p126 = pneg %p120
      %p127 = scmp.eq.s32.totalorder %s19, 1
      %p128 = por %p126, %p127
      %p129 = scmp.ne.s32.totalorder %s121, %s124
      %p130 = scmp.eq.s32.totalorder %s19, 0
      %p131 = por %p129, %p130
      %p132 = scmp.ne.s32.totalorder %s121, %s124
      %p133 = scmp.eq.s32.totalorder %s24, 1
      %p134 = por %p132, %p133
      %p135 = scmp.ne.s32.totalorder %s124, %s125
      %p136 = scmp.eq.s32.totalorder %s24, 0
      %p137 = por %p135, %p136
      %p138 = scmp.ne.s32.totalorder %s124, %s125
      %p139 = scmp.eq.s32.totalorder %s25, 1
      %p140 = por %p138, %p139
      %p142 = scmp.ne.s32.totalorder %s125, %s141
      %p143 = scmp.eq.s32.totalorder %s25, 0
      %p144 = por %p142, %p143
      %p145 = scmp.le.s32.totalorder 1, %s19
      %p146 = scmp.lt.s32.totalorder %s19, 3
      %p147 = pnand %p145, %p146
      %p148 = pneg %p147
      // Predicated region
      $region9: #{tpu_custom_call.1} parent=5 // pred_check
        _
      $region10: #{tpu_custom_call.1} parent=5 // pred_check_branch
        %150 = sbr.rel (%p147) target = $region12
      $region11: #{tpu_custom_call.1} parent=5 // pred_region
        %s151 = ssub.s32 %s19, 1
      $region12: #{tpu_custom_call.1} parent=5 // pred_fallthru
        _
      %p152 = scmp.lt.s32.totalorder %s19, 2
      // Predicated region
      $region13: #{tpu_custom_call.1} parent=5 // pred_check
        %p153 = pneg %p152
      $region14: #{tpu_custom_call.1} parent=5 // pred_check_branch
        %155 = sbr.rel (%p153) target = $region16
      $region15: #{tpu_custom_call.1} parent=5 // pred_region
        // Predicated region
        $region17: #{tpu_custom_call.1} parent=15 // pred_check
          %p156 = pneg %p53
        $region18: #{tpu_custom_call.1} parent=15 // pred_check_branch
          %158 = sbr.rel (%p156) target = $region20
        $region19: #{tpu_custom_call.1} parent=15 // pred_region
          %s159 = sand.u32 %s43, 1
          %s160 = scalar_lea.sflag [#allocation3], %s159
          %s161 = sand.u32 %s43, 1
          %s162 = smul.addr %s161, 24
          %s163 = scalar_lea.vmem [#allocation2], %s162
          %s164 = sadd.s32 %s26, %s27
          %s166 = ssub.s32 384, 384
          %167 = vsyncadd %s160, %s166
          %s168 = smul.addr %s164, 128
          %s169 = scalar_lea.hbm %s0, %s168
          %s170 = sshll.u32 %s163, 4
          %s171 = int_to_ptr.vmem [resolvable:$true] %s170
          %176 = dma.hbm_to_vmem [thread:$0]  %s169, 384, %s171, %s160, 256, 128, 8
        $region20: #{tpu_custom_call.1} parent=15 // pred_fallthru
          _
      $region16: #{tpu_custom_call.1} parent=5 // pred_fallthru
        _
      %p177 = scmp.le.s32.totalorder 1, %s19
      %p178 = scmp.lt.s32.totalorder %s19, 3
      %p179 = pnand %p177, %p178
      %p180 = pneg %p179
      // Predicated region
      $region21: #{tpu_custom_call.1} parent=5 // pred_check
        _
      $region22: #{tpu_custom_call.1} parent=5 // pred_check_branch
        %182 = sbr.rel (%p179) target = $region24
      $region23: #{tpu_custom_call.1} parent=5 // pred_region
        %s183 = ssub.s32 %s19, 1
        %s184 = sand.u32 %s46, 1
        %s185 = scalar_lea.sflag [#allocation3], %s184
        %s186 = sand.u32 %s46, 1
        %s187 = smul.addr %s186, 24
        %s188 = scalar_lea.vmem [#allocation2], %s187
        // Predicated region
        $region25: #{tpu_custom_call.1} parent=23 // pred_check
          %p189 = pneg %p59
        $region26: #{tpu_custom_call.1} parent=23 // pred_check_branch
          %191 = sbr.rel (%p189) target = $region28
        $region27: #{tpu_custom_call.1} parent=23 // pred_region
          %192 = dma.done %s185, 384
        $region28: #{tpu_custom_call.1} parent=23 // pred_fallthru
          _
        %s193 = sand.u32 %s46, 1
        %s194 = scalar_lea.sflag [#allocation3], %s193
        %s195 = sand.u32 %s46, 1
        %s196 = smul.addr %s195, 24
        %s197 = scalar_lea.vmem [#allocation2], %s196
        %p198 = pneg %p59
        %p199 = pneg %p56
        %p200 = pneg %p85
        %p201 = pneg %p82
        %p202 = scmp.lt.s32.totalorder %s28, 1
        %s203 = scalar_select %p202, %s28, 1
        %s204 = scalar_lea.vmem %s1, %s203
        %p205 = pneg %p111
        %p206 = pneg %p108
        %s207 = sand.u32 %s98, 1
        %s208 = scalar_lea.sflag [#allocation4], %s207
        %s209 = sand.u32 %s98, 1
        %s210 = scalar_lea.vmem [#allocation5], %s209
        %p211 = pneg %p137
        %p212 = pneg %p134
        %s213 = sand.u32 %s124, 1
        %s214 = scalar_lea.sflag [#allocation7], %s213
        %s215 = sand.u32 %s124, 1
        %s216 = scalar_lea.vmem [#allocation6], %s215
        %s217 = sadd.s32 %s28, %s29
        %p218 = scmp.lt.s32.totalorder %s28, 1
        %s219 = scalar_select %p218, %s28, 1
        %s220 = scalar_lea.vmem %s1, %s219
        %p221 = scmp.eq.s32.totalorder %s29, 0
        // Predicated region
        $region29: #{tpu_custom_call.1} parent=23 // pred_check
          %p222 = pneg %p221
        $region30: #{tpu_custom_call.1} parent=23 // pred_check_branch
          %224 = sbr.rel (%p222) target = $region32
        $region31: #{tpu_custom_call.1} parent=23 // pred_region
          %vm225 = vcmask 0
          %226 = vst.msk [vmem:[%s220] sm:$0x1] %vm225, 0.0
          %vm227 = vcmask 16384
          %228 = vst.msk [vmem:[%s210] sm:$0x1] %vm227, 0.0
          %vm229 = vcmask 65536
          %230 = vst.msk [vmem:[%s216] sm:$0x1] %vm229, 0.0
        $region32: #{tpu_custom_call.1} parent=23 // pred_fallthru
          _
        %v231 = vld [vmem:[%s188] sm:$0xff]
        %v232 = vld [vmem:[%s188 + $0x8] sm:$0xff]
        %v233 = vld [vmem:[%s188 + $0x10] sm:$0xff]
        %v234 = vadd.f32 %v231, 1.0
        %v235 = vadd.f32 %v232, 1.0
        %v236 = vadd.f32 %v233, 1.0
        %v237 = vrcp.pop 240.0
        %v238 = vmul.f32 %v234, %v237
        %v239 = vmul.f32 %v235, %v237
        %v240 = vmul.f32 %v236, %v237
        %v241 = vlog2.pop %v238
        %v242 = vmul.f32 %v241, 0.6931472
        %v243 = vlog2.pop %v239
        %v244 = vmul.f32 %v243, 0.6931472
        %v245 = vlog2.pop %v240
        %v246 = vmul.f32 %v245, 0.6931472
        %v247 = vsub.f32 0.0, %v242
        %v248 = vsub.f32 0.0, %v244
        %v249 = vsub.f32 0.0, %v246
        %vm250 = vcmp.ge.f32.partialorder %v247, 0.15
        %vm251 = vcmp.ge.f32.partialorder %v248, 0.15
        %vm252 = vmand %vm250, %vm251
        %vm253 = vcmp.ge.f32.partialorder %v249, 0.15
        %vm254 = vmand %vm252, %vm253
        %v255 = vsel %vm254, 1, 0
        %v256 = vcvt.s32.f32 %v255
        %v257 = vmul.f32 %v247, %v256
        %v258 = vmul.f32 %v248, %v256
        %v259 = vmul.f32 %v249, %v256
        %v260 = vld [vmem:[%s220] sm:$0x1]
        %261 = vadd.xlane.f32.xlu0 %v256
        %v262 = vpop.xlane.xlu0 %261
        %v263 = vrot.slane %v262, 4
        %v264 = vadd.f32 %v262, %v263
        %v265 = vrot.slane %v264, 2
        %v266 = vadd.f32 %v264, %v265
        %v267 = vrot.slane %v266, 1
        %v268 = vadd.f32 %v266, %v267
        %s269 = vtos %v268
        %v270 = vstv %s269
        %v271 = vadd.f32 %v260, %v270
        %vm272 = vcmask 0
        %273 = vst.msk [vmem:[%s220] sm:$0x1] %vm272, %v271
        %v274 = vld [vmem:[%s210] sm:$0x1]
        %275 = vadd.xlane.f32.xlu0 %v257
        %v276 = vpop.xlane.xlu0 %275
        %v277 = vrot.slane %v276, 4
        %v278 = vadd.f32 %v276, %v277
        %v279 = vrot.slane %v278, 2
        %v280 = vadd.f32 %v278, %v279
        %v281 = vrot.slane %v280, 1
        %v282 = vadd.f32 %v280, %v281
        %s283 = vtos %v282
        %v284 = vstv %s283
        %285 = vadd.xlane.f32.xlu0 %v258
        %v286 = vpop.xlane.xlu0 %285
        %v287 = vrot.slane %v286, 4
        %v288 = vadd.f32 %v286, %v287
        %v289 = vrot.slane %v288, 2
        %v290 = vadd.f32 %v288, %v289
        %v291 = vrot.slane %v290, 1
        %v292 = vadd.f32 %v290, %v291
        %s293 = vtos %v292
        %v294 = vstv %s293
        %295 = vadd.xlane.f32.xlu0 %v259
        %v296 = vpop.xlane.xlu0 %295
        %v297 = vrot.slane %v296, 4
        %v298 = vadd.f32 %v296, %v297
        %v299 = vrot.slane %v298, 2
        %v300 = vadd.f32 %v298, %v299
        %v301 = vrot.slane %v300, 1
        %v302 = vadd.f32 %v300, %v301
        %s303 = vtos %v302
        %v304 = vstv %s303
        %vm305 = vcmask 7168
        %v306 = vsel %vm305, %v284, %v294
        %vm307 = vcmask 15360
        %v308 = vsel %vm307, %v306, %v304
        %v309 = vadd.f32 %v274, %v308
        %vm310 = vcmask 16384
        %311 = vst.msk [vmem:[%s210] sm:$0x1] %vm310, %v309
        %v312 = vmul.f32 %v257, %v247
        %313 = vadd.xlane.f32.xlu0 %v312
        %v314 = vpop.xlane.xlu0 %313
        %v315 = vrot.slane %v314, 4
        %v316 = vadd.f32 %v314, %v315
        %v317 = vrot.slane %v316, 2
        %v318 = vadd.f32 %v316, %v317
        %v319 = vrot.slane %v318, 1
        %v320 = vadd.f32 %v318, %v319
        %s321 = vtos %v320
        %v322 = vstv %s321
        %v323 = vmul.f32 %v257, %v248
        %324 = vadd.xlane.f32.xlu0 %v323
        %v325 = vpop.xlane.xlu0 %324
        %v326 = vrot.slane %v325, 4
        %v327 = vadd.f32 %v325, %v326
        %v328 = vrot.slane %v327, 2
        %v329 = vadd.f32 %v327, %v328
        %v330 = vrot.slane %v329, 1
        %v331 = vadd.f32 %v329, %v330
        %s332 = vtos %v331
        %v333 = vstv %s332
        %v334 = vmul.f32 %v257, %v249
        %335 = vadd.xlane.f32.xlu0 %v334
        %v336 = vpop.xlane.xlu0 %335
        %v337 = vrot.slane %v336, 4
        %v338 = vadd.f32 %v336, %v337
        %v339 = vrot.slane %v338, 2
        %v340 = vadd.f32 %v338, %v339
        %v341 = vrot.slane %v340, 1
        %v342 = vadd.f32 %v340, %v341
        %s343 = vtos %v342
        %v344 = vstv %s343
        %v345 = vmul.f32 %v258, %v248
        %346 = vadd.xlane.f32.xlu0 %v345
        %v347 = vpop.xlane.xlu0 %346
        %v348 = vrot.slane %v347, 4
        %v349 = vadd.f32 %v347, %v348
        %v350 = vrot.slane %v349, 2
        %v351 = vadd.f32 %v349, %v350
        %v352 = vrot.slane %v351, 1
        %v353 = vadd.f32 %v351, %v352
        %s354 = vtos %v353
        %v355 = vstv %s354
        %v356 = vmul.f32 %v258, %v249
        %357 = vadd.xlane.f32.xlu0 %v356
        %v358 = vpop.xlane.xlu0 %357
        %v359 = vrot.slane %v358, 4
        %v360 = vadd.f32 %v358, %v359
        %v361 = vrot.slane %v360, 2
        %v362 = vadd.f32 %v360, %v361
        %v363 = vrot.slane %v362, 1
        %v364 = vadd.f32 %v362, %v363
        %s365 = vtos %v364
        %v366 = vstv %s365
        %v367 = vmul.f32 %v259, %v249
        %368 = vadd.xlane.f32.xlu0 %v367
        %v369 = vpop.xlane.xlu0 %368
        %v370 = vrot.slane %v369, 4
        %v371 = vadd.f32 %v369, %v370
        %v372 = vrot.slane %v371, 2
        %v373 = vadd.f32 %v371, %v372
        %v374 = vrot.slane %v373, 1
        %v375 = vadd.f32 %v373, %v374
        %s376 = vtos %v375
        %v377 = vstv %s376
        %v378 = vld [vmem:[%s216] sm:$0x1]
        %v379 = vsel %vm305, %v322, %v333
        %v380 = vsel %vm307, %v379, %v344
        %vm381 = vcmask 23552
        %v382 = vsel %vm381, %v380, %v333
        %vm383 = vcmask 31744
        %v384 = vsel %vm383, %v382, %v355
        %vm385 = vcmask 39936
        %v386 = vsel %vm385, %v384, %v366
        %vm387 = vcmask 48128
        %v388 = vsel %vm387, %v386, %v344
        %vm389 = vcmask 56320
        %v390 = vsel %vm389, %v388, %v366
        %vm391 = vcmask 64512
        %v392 = vsel %vm391, %v390, %v377
        %v393 = vadd.f32 %v378, %v392
        %vm394 = vcmask 65536
        %395 = vst.msk [vmem:[%s216] sm:$0x1] %vm394, %v393
        %p396 = scmp.lt.s32.totalorder %s28, 1
        %s397 = scalar_select %p396, %s28, 1
        %s398 = scalar_lea.vmem %s1, %s397
        %s399 = sand.u32 %s98, 1
        %s400 = scalar_lea.sflag [#allocation4], %s399
        %s401 = sand.u32 %s98, 1
        %s402 = scalar_lea.vmem [#allocation5], %s401
        %s403 = sand.u32 %s124, 1
        %s404 = scalar_lea.sflag [#allocation7], %s403
        %s405 = sand.u32 %s124, 1
        %s406 = scalar_lea.vmem [#allocation6], %s405
        // Predicated region
        $region33: #{tpu_custom_call.1} parent=23 // pred_check
          %p407 = pneg %p82
        $region34: #{tpu_custom_call.1} parent=23 // pred_check_branch
          %409 = sbr.rel (%p407) target = $region36
        $region35: #{tpu_custom_call.1} parent=23 // pred_region
          _
        $region36: #{tpu_custom_call.1} parent=23 // pred_fallthru
          _
        // Predicated region
        $region37: #{tpu_custom_call.1} parent=23 // pred_check
          %p410 = pneg %p108
        $region38: #{tpu_custom_call.1} parent=23 // pred_check_branch
          %412 = sbr.rel (%p410) target = $region40
        $region39: #{tpu_custom_call.1} parent=23 // pred_region
          %s414 = ssub.s32 16, 16
          %415 = vsyncadd %s400, %s414
          %s416 = smul.addr %s28, 16
          %s417 = scalar_lea.hbm %s2, %s416
          %s419 = sshll.u32 %s402, 4
          %s420 = int_to_ptr.vmem [resolvable:$true] %s419
          %422 = dma.vmem_to_hbm [thread:$0]  %s420, 16, %s417, %s400
        $region40: #{tpu_custom_call.1} parent=23 // pred_fallthru
          _
        // Predicated region
        $region41: #{tpu_custom_call.1} parent=23 // pred_check
          %p423 = pneg %p134
        $region42: #{tpu_custom_call.1} parent=23 // pred_check_branch
          %425 = sbr.rel (%p423) target = $region44
        $region43: #{tpu_custom_call.1} parent=23 // pred_region
          %s427 = ssub.s32 16, 16
          %428 = vsyncadd %s404, %s427
          %s429 = smul.addr %s28, 16
          %s430 = scalar_lea.hbm %s3, %s429
          %s432 = sshll.u32 %s406, 4
          %s433 = int_to_ptr.vmem [resolvable:$true] %s432
          %435 = dma.vmem_to_hbm [thread:$0]  %s433, 16, %s430, %s404
        $region44: #{tpu_custom_call.1} parent=23 // pred_fallthru
          _
      $region24: #{tpu_custom_call.1} parent=5 // pred_fallthru
        _
      %p436 = scmp.le.s32.totalorder 2, %s19
      // Predicated region
      $region45: #{tpu_custom_call.1} parent=5 // pred_check
        %p437 = pneg %p436
      $region46: #{tpu_custom_call.1} parent=5 // pred_check_branch
        %439 = sbr.rel (%p437) target = $region48
      $region47: #{tpu_custom_call.1} parent=5 // pred_region
        %s440 = ssub.s32 %s19, 2
        // Predicated region
        $region49: #{tpu_custom_call.1} parent=47 // pred_check
          %p441 = pneg %p88
        $region50: #{tpu_custom_call.1} parent=47 // pred_check_branch
          %443 = sbr.rel (%p441) target = $region52
        $region51: #{tpu_custom_call.1} parent=47 // pred_region
          %p444 = scmp.lt.s32.totalorder %s30, 1
          %s445 = scalar_select %p444, %s30, 1
          %s446 = scalar_lea.vmem %s1, %s445
        $region52: #{tpu_custom_call.1} parent=47 // pred_fallthru
          _
        // Predicated region
        $region53: #{tpu_custom_call.1} parent=47 // pred_check
          %p447 = pneg %p114
        $region54: #{tpu_custom_call.1} parent=47 // pred_check_branch
          %449 = sbr.rel (%p447) target = $region56
        $region55: #{tpu_custom_call.1} parent=47 // pred_region
          %s450 = sand.u32 %s99, 1
          %s451 = scalar_lea.sflag [#allocation4], %s450
          %s452 = sand.u32 %s99, 1
          %s453 = scalar_lea.vmem [#allocation5], %s452
          %454 = dma.done %s451, 16
        $region56: #{tpu_custom_call.1} parent=47 // pred_fallthru
          _
        // Predicated region
        $region57: #{tpu_custom_call.1} parent=47 // pred_check
          %p455 = pneg %p140
        $region58: #{tpu_custom_call.1} parent=47 // pred_check_branch
          %457 = sbr.rel (%p455) target = $region60
        $region59: #{tpu_custom_call.1} parent=47 // pred_region
          %s458 = sand.u32 %s125, 1
          %s459 = scalar_lea.sflag [#allocation7], %s458
          %s460 = sand.u32 %s125, 1
          %s461 = scalar_lea.vmem [#allocation6], %s460
          %462 = dma.done %s459, 16
        $region60: #{tpu_custom_call.1} parent=47 // pred_fallthru
          _
      $region48: #{tpu_custom_call.1} parent=5 // pred_fallthru
        _
    $region6: #{tpu_custom_call.1} parent=1 // loop_footer
      %s23 = sadd.s32 1, %s19
    $region7: #{tpu_custom_call.1} parent=1 // loop_footer_branch
      %18 = sbr.rel target = $region3
    $region8: #{tpu_custom_call.1} parent=1 // loop_exit
      _
    %463 = vsyncpa [#allocation3], 1
    %s464 = scalar_lea.sflag [#allocation3], 1
    %465 = vsyncpa %s464, 1
    %466 = vsyncpa [#allocation4], 1
    %s467 = scalar_lea.sflag [#allocation4], 1
    %468 = vsyncpa %s467, 1
    %469 = vsyncpa [#allocation7], 1
    %s470 = scalar_lea.sflag [#allocation7], 1
    %471 = vsyncpa %s470, 1

</llo_original>
